<compile_context>
chip_gen: v7x
topology: tpu7x:2x2x1
jax: 0.10.0
libtpu: 0.0.40
codegen_flags: <defaults>
</compile_context>

<pallas_src>
import functools

import jax
import jax.numpy as jnp
from jax.experimental import pallas as pl
from jax.experimental.pallas import tpu as pltpu

EPS = 1e-8  # FcNet constructor default eps=1e-08 (explicit in the spec).


def _fcnet(x, g1, b1, w1, g2, b2, w2):
    """FcNet forward on VMEM-resident f32 values."""
    # input BatchNorm1d (training-mode batch statistics, biased variance)
    mu = jnp.mean(x, axis=0, keepdims=True)
    var = jnp.mean((x - mu) * (x - mu), axis=0, keepdims=True)
    x = (x - mu) * jax.lax.rsqrt(var + EPS)
    x = x * g1 + b1

    # fc1 (no bias): (B, F) @ (F, H) on the MXU
    h = jnp.dot(x, w1, preferred_element_type=jnp.float32)

    # fc_bn
    mu2 = jnp.mean(h, axis=0, keepdims=True)
    var2 = jnp.mean((h - mu2) * (h - mu2), axis=0, keepdims=True)
    h = (h - mu2) * jax.lax.rsqrt(var2 + EPS)
    h = h * g2 + b2

    # GELU (tanh form -> EUP slot)
    h = jax.nn.gelu(h, approximate=True)

    # fc2 (no bias): (B, H) @ (H, C)
    return jnp.dot(h, w2, preferred_element_type=jnp.float32)


def _comprehension_kernel(
        coarse_ref, low_ref, mid_ref, hig_ref,
        cg1_ref, cb1_ref, cw1_ref, cg2_ref, cb2_ref, cw2_ref,
        mg1_ref, mb1_ref, mw1_ref, mg2_ref, mb2_ref, mw2_ref,
        out_ref):
    """Fused: build com_vectors in VMEM, run both FcNets, one lane-dense store."""
    # com_vectors = cat([low[:,0], mid[:,0], hig[:,0]], dim=1), entirely in VMEM.
    com = jnp.concatenate(
        [low_ref[:, 0, :], mid_ref[:, 0, :], hig_ref[:, 0, :]], axis=-1)

    coarse_logits = _fcnet(
        coarse_ref[...].astype(jnp.float32),
        cg1_ref[...], cb1_ref[...], cw1_ref[...],
        cg2_ref[...], cb2_ref[...], cw2_ref[...])

    com_logits = _fcnet(
        com.astype(jnp.float32),
        mg1_ref[...], mb1_ref[...], mw1_ref[...],
        mg2_ref[...], mb2_ref[...], mw2_ref[...])

    # Single merged writeback: (B, 2*C) = [coarse_logits | com_logits].
    out_ref[...] = jnp.concatenate([coarse_logits, com_logits], axis=-1)


def comprehension_module_forward(low_vectors, mid_vectors, hig_vectors,
                                 coarse_vectors, coarse_fc_params,
                                 com_fc_params):
    # TODO(synk): ComprehensionLayer source unavailable -> identity pass-through.
    B = coarse_vectors.shape[0]
    C = coarse_fc_params[-1].shape[1]

    vmem = pl.BlockSpec(memory_space=pltpu.MemorySpace.VMEM)
    merged = pl.pallas_call(
        _comprehension_kernel,
        out_shape=jax.ShapeDtypeStruct((B, 2 * C), jnp.float32),
        in_specs=[vmem] * 16,
        out_specs=vmem,
    )(coarse_vectors, low_vectors, mid_vectors, hig_vectors,
      *coarse_fc_params, *com_fc_params)

    coarse_logits = merged[:, :C]
    com_logits = merged[:, C:]
    return coarse_logits, com_logits


def make_fcnet_params(key, in_features, hidden_units, num_class):
    """Deterministic FcNet parameters (PyTorch-style init, pre-transposed)."""
    k1, k2 = jax.random.split(key)
    bound1 = 1.0 / jnp.sqrt(in_features)
    bound2 = 1.0 / jnp.sqrt(hidden_units)
    # Linear weights stored pre-transposed: (in, out)
    w1 = jax.random.uniform(k1, (in_features, hidden_units), jnp.float32,
                            -bound1, bound1)
    w2 = jax.random.uniform(k2, (hidden_units, num_class), jnp.float32,
                            -bound2, bound2)
    # BatchNorm affine params (gamma=1, beta=0), kept (1, F) for lane layout.
    g1 = jnp.ones((1, in_features), jnp.float32)
    b1 = jnp.zeros((1, in_features), jnp.float32)
    g2 = jnp.ones((1, hidden_units), jnp.float32)
    b2 = jnp.zeros((1, hidden_units), jnp.float32)
    return (g1, b1, w1, g2, b2, w2)


if __name__ == "__main__":
    # Small, module-consistent shapes.
    B = 4            # batch (>1 so batch-norm statistics are well defined)
    S = 8            # sequence length
    E = 32           # embedding_dim
    NUM_CLASS = 16   # num_class (kept small for the synthetic run)

    key = jax.random.PRNGKey(0)
    k_low, k_mid, k_hig, k_coarse, k_p1, k_p2 = jax.random.split(key, 6)

    low_vectors = jax.random.normal(k_low, (B, S, E), jnp.float32)
    mid_vectors = jax.random.normal(k_mid, (B, S, E), jnp.float32)
    hig_vectors = jax.random.normal(k_hig, (B, S, E), jnp.float32)
    coarse_vectors = jax.random.normal(k_coarse, (B, 3 * E), jnp.float32)

    coarse_fc_params = make_fcnet_params(k_p1, 3 * E, E, NUM_CLASS)
    com_fc_params = make_fcnet_params(k_p2, 3 * E, E, NUM_CLASS)

    fwd = jax.jit(functools.partial(
        comprehension_module_forward,
        coarse_fc_params=coarse_fc_params,
        com_fc_params=com_fc_params))

    coarse_logits, com_logits = fwd(low_vectors, mid_vectors, hig_vectors,
                                    coarse_vectors)
    jax.block_until_ready((coarse_logits, com_logits))

    assert coarse_logits.shape == (B, NUM_CLASS)
    assert com_logits.shape == (B, NUM_CLASS)
    assert bool(jnp.all(jnp.isfinite(coarse_logits)))
    assert bool(jnp.all(jnp.isfinite(com_logits)))
    print("KERNEL_OK")
</pallas_src>

<mosaic_0001>
module attributes {stable_mosaic.version = 11 : i64} {
  func.func @_comprehension_kernel(%arg0: memref<4x96xf32, #tpu.memory_space<vmem>>, %arg1: memref<4x8x32xf32, #tpu.memory_space<vmem>>, %arg2: memref<4x8x32xf32, #tpu.memory_space<vmem>>, %arg3: memref<4x8x32xf32, #tpu.memory_space<vmem>>, %arg4: memref<1x96xf32, #tpu.memory_space<vmem>>, %arg5: memref<1x96xf32, #tpu.memory_space<vmem>>, %arg6: memref<96x32xf32, #tpu.memory_space<vmem>>, %arg7: memref<1x32xf32, #tpu.memory_space<vmem>>, %arg8: memref<1x32xf32, #tpu.memory_space<vmem>>, %arg9: memref<32x16xf32, #tpu.memory_space<vmem>>, %arg10: memref<1x96xf32, #tpu.memory_space<vmem>>, %arg11: memref<1x96xf32, #tpu.memory_space<vmem>>, %arg12: memref<96x32xf32, #tpu.memory_space<vmem>>, %arg13: memref<1x32xf32, #tpu.memory_space<vmem>>, %arg14: memref<1x32xf32, #tpu.memory_space<vmem>>, %arg15: memref<32x16xf32, #tpu.memory_space<vmem>>, %arg16: memref<4x32xf32, #tpu.memory_space<vmem>>) attributes {dimension_semantics = [], scalar_prefetch = 0 : i64, scratch_operands = 0 : i64, tpu.core_type = #tpu.core_type<tc>} {
    %c0 = arith.constant 0 : index
    %c0_0 = arith.constant 0 : index
    %c0_1 = arith.constant 0 : index
    %0 = vector.load %arg1[%c0, %c0_0, %c0_1] : memref<4x8x32xf32, #tpu.memory_space<vmem>>, vector<4x1x32xf32>
    %1 = vector.shape_cast %0 : vector<4x1x32xf32> to vector<4x32xf32>
    %c0_2 = arith.constant 0 : index
    %c0_3 = arith.constant 0 : index
    %c0_4 = arith.constant 0 : index
    %2 = vector.load %arg2[%c0_2, %c0_3, %c0_4] : memref<4x8x32xf32, #tpu.memory_space<vmem>>, vector<4x1x32xf32>
    %3 = vector.shape_cast %2 : vector<4x1x32xf32> to vector<4x32xf32>
    %c0_5 = arith.constant 0 : index
    %c0_6 = arith.constant 0 : index
    %c0_7 = arith.constant 0 : index
    %4 = vector.load %arg3[%c0_5, %c0_6, %c0_7] : memref<4x8x32xf32, #tpu.memory_space<vmem>>, vector<4x1x32xf32>
    %5 = vector.shape_cast %4 : vector<4x1x32xf32> to vector<4x32xf32>
    %6 = tpu.concatenate %1, %3, %5 in 1 : vector<4x32xf32>, vector<4x32xf32>, vector<4x32xf32> -> vector<4x96xf32>
    %c0_8 = arith.constant 0 : index
    %c0_9 = arith.constant 0 : index
    %7 = vector.load %arg0[%c0_8, %c0_9] : memref<4x96xf32, #tpu.memory_space<vmem>>, vector<4x96xf32>
    %c0_10 = arith.constant 0 : index
    %c0_11 = arith.constant 0 : index
    %8 = vector.load %arg4[%c0_10, %c0_11] : memref<1x96xf32, #tpu.memory_space<vmem>>, vector<1x96xf32>
    %c0_12 = arith.constant 0 : index
    %c0_13 = arith.constant 0 : index
    %9 = vector.load %arg5[%c0_12, %c0_13] : memref<1x96xf32, #tpu.memory_space<vmem>>, vector<1x96xf32>
    %c0_14 = arith.constant 0 : index
    %c0_15 = arith.constant 0 : index
    %10 = vector.load %arg6[%c0_14, %c0_15] : memref<96x32xf32, #tpu.memory_space<vmem>>, vector<96x32xf32>
    %c0_16 = arith.constant 0 : index
    %c0_17 = arith.constant 0 : index
    %11 = vector.load %arg7[%c0_16, %c0_17] : memref<1x32xf32, #tpu.memory_space<vmem>>, vector<1x32xf32>
    %c0_18 = arith.constant 0 : index
    %c0_19 = arith.constant 0 : index
    %12 = vector.load %arg8[%c0_18, %c0_19] : memref<1x32xf32, #tpu.memory_space<vmem>>, vector<1x32xf32>
    %c0_20 = arith.constant 0 : index
    %c0_21 = arith.constant 0 : index
    %13 = vector.load %arg9[%c0_20, %c0_21] : memref<32x16xf32, #tpu.memory_space<vmem>>, vector<32x16xf32>
    %cst = arith.constant dense<0.000000e+00> : vector<96xf32>
    %14 = vector.multi_reduction <add>, %7, %cst [0] : vector<4x96xf32> to vector<96xf32>
    %15 = vector.shape_cast %14 : vector<96xf32> to vector<1x96xf32>
    %cst_22 = arith.constant 4.000000e+00 : f32
    %16 = vector.broadcast %cst_22 : f32 to vector<1x96xf32>
    %17 = arith.divf %15, %16 : vector<1x96xf32>
    %18 = vector.broadcast %17 : vector<1x96xf32> to vector<4x96xf32>
    %19 = arith.subf %7, %18 : vector<4x96xf32>
    %20 = vector.broadcast %17 : vector<1x96xf32> to vector<4x96xf32>
    %21 = arith.subf %7, %20 : vector<4x96xf32>
    %22 = arith.mulf %19, %21 : vector<4x96xf32>
    %cst_23 = arith.constant dense<0.000000e+00> : vector<96xf32>
    %23 = vector.multi_reduction <add>, %22, %cst_23 [0] : vector<4x96xf32> to vector<96xf32>
    %24 = vector.shape_cast %23 : vector<96xf32> to vector<1x96xf32>
    %cst_24 = arith.constant 4.000000e+00 : f32
    %25 = vector.broadcast %cst_24 : f32 to vector<1x96xf32>
    %26 = arith.divf %24, %25 : vector<1x96xf32>
    %27 = vector.broadcast %17 : vector<1x96xf32> to vector<4x96xf32>
    %28 = arith.subf %7, %27 : vector<4x96xf32>
    %cst_25 = arith.constant 9.99999993E-9 : f32
    %29 = vector.broadcast %cst_25 : f32 to vector<1x96xf32>
    %30 = arith.addf %26, %29 : vector<1x96xf32>
    %31 = math.rsqrt %30 : vector<1x96xf32>
    %32 = vector.broadcast %31 : vector<1x96xf32> to vector<4x96xf32>
    %33 = arith.mulf %28, %32 : vector<4x96xf32>
    %34 = vector.broadcast %8 : vector<1x96xf32> to vector<4x96xf32>
    %35 = arith.mulf %33, %34 : vector<4x96xf32>
    %36 = vector.broadcast %9 : vector<1x96xf32> to vector<4x96xf32>
    %37 = arith.addf %35, %36 : vector<4x96xf32>
    %cst_26 = arith.constant dense<0.000000e+00> : vector<4x32xf32>
    %38 = tpu.matmul %37, %10, %cst_26 {dimension_numbers = #tpu.dot_dimension_numbers<[1], [0], [0], [1], [0, 0, 1, 1], [], []>} : vector<4x96xf32>, vector<96x32xf32>, vector<4x32xf32> -> vector<4x32xf32>
    %cst_27 = arith.constant dense<0.000000e+00> : vector<32xf32>
    %39 = vector.multi_reduction <add>, %38, %cst_27 [0] : vector<4x32xf32> to vector<32xf32>
    %40 = vector.shape_cast %39 : vector<32xf32> to vector<1x32xf32>
    %cst_28 = arith.constant 4.000000e+00 : f32
    %41 = vector.broadcast %cst_28 : f32 to vector<1x32xf32>
    %42 = arith.divf %40, %41 : vector<1x32xf32>
    %43 = vector.broadcast %42 : vector<1x32xf32> to vector<4x32xf32>
    %44 = arith.subf %38, %43 : vector<4x32xf32>
    %45 = vector.broadcast %42 : vector<1x32xf32> to vector<4x32xf32>
    %46 = arith.subf %38, %45 : vector<4x32xf32>
    %47 = arith.mulf %44, %46 : vector<4x32xf32>
    %cst_29 = arith.constant dense<0.000000e+00> : vector<32xf32>
    %48 = vector.multi_reduction <add>, %47, %cst_29 [0] : vector<4x32xf32> to vector<32xf32>
    %49 = vector.shape_cast %48 : vector<32xf32> to vector<1x32xf32>
    %cst_30 = arith.constant 4.000000e+00 : f32
    %50 = vector.broadcast %cst_30 : f32 to vector<1x32xf32>
    %51 = arith.divf %49, %50 : vector<1x32xf32>
    %52 = vector.broadcast %42 : vector<1x32xf32> to vector<4x32xf32>
    %53 = arith.subf %38, %52 : vector<4x32xf32>
    %cst_31 = arith.constant 9.99999993E-9 : f32
    %54 = vector.broadcast %cst_31 : f32 to vector<1x32xf32>
    %55 = arith.addf %51, %54 : vector<1x32xf32>
    %56 = math.rsqrt %55 : vector<1x32xf32>
    %57 = vector.broadcast %56 : vector<1x32xf32> to vector<4x32xf32>
    %58 = arith.mulf %53, %57 : vector<4x32xf32>
    %59 = vector.broadcast %11 : vector<1x32xf32> to vector<4x32xf32>
    %60 = arith.mulf %58, %59 : vector<4x32xf32>
    %61 = vector.broadcast %12 : vector<1x32xf32> to vector<4x32xf32>
    %62 = arith.addf %60, %61 : vector<4x32xf32>
    %63 = arith.mulf %62, %62 : vector<4x32xf32>
    %64 = arith.mulf %62, %63 : vector<4x32xf32>
    %cst_32 = arith.constant 4.471500e-02 : f32
    %65 = vector.broadcast %cst_32 : f32 to vector<4x32xf32>
    %66 = arith.mulf %65, %64 : vector<4x32xf32>
    %67 = arith.addf %62, %66 : vector<4x32xf32>
    %cst_33 = arith.constant 0.797884583 : f32
    %68 = vector.broadcast %cst_33 : f32 to vector<4x32xf32>
    %69 = arith.mulf %68, %67 : vector<4x32xf32>
    %70 = math.tanh %69 : vector<4x32xf32>
    %cst_34 = arith.constant 1.000000e+00 : f32
    %71 = vector.broadcast %cst_34 : f32 to vector<4x32xf32>
    %72 = arith.addf %71, %70 : vector<4x32xf32>
    %cst_35 = arith.constant 5.000000e-01 : f32
    %73 = vector.broadcast %cst_35 : f32 to vector<4x32xf32>
    %74 = arith.mulf %73, %72 : vector<4x32xf32>
    %75 = arith.mulf %62, %74 : vector<4x32xf32>
    %cst_36 = arith.constant dense<0.000000e+00> : vector<4x16xf32>
    %76 = tpu.matmul %75, %13, %cst_36 {dimension_numbers = #tpu.dot_dimension_numbers<[1], [0], [0], [1], [0, 0, 1, 1], [], []>} : vector<4x32xf32>, vector<32x16xf32>, vector<4x16xf32> -> vector<4x16xf32>
    %c0_37 = arith.constant 0 : index
    %c0_38 = arith.constant 0 : index
    %77 = vector.load %arg10[%c0_37, %c0_38] : memref<1x96xf32, #tpu.memory_space<vmem>>, vector<1x96xf32>
    %c0_39 = arith.constant 0 : index
    %c0_40 = arith.constant 0 : index
    %78 = vector.load %arg11[%c0_39, %c0_40] : memref<1x96xf32, #tpu.memory_space<vmem>>, vector<1x96xf32>
    %c0_41 = arith.constant 0 : index
    %c0_42 = arith.constant 0 : index
    %79 = vector.load %arg12[%c0_41, %c0_42] : memref<96x32xf32, #tpu.memory_space<vmem>>, vector<96x32xf32>
    %c0_43 = arith.constant 0 : index
    %c0_44 = arith.constant 0 : index
    %80 = vector.load %arg13[%c0_43, %c0_44] : memref<1x32xf32, #tpu.memory_space<vmem>>, vector<1x32xf32>
    %c0_45 = arith.constant 0 : index
    %c0_46 = arith.constant 0 : index
    %81 = vector.load %arg14[%c0_45, %c0_46] : memref<1x32xf32, #tpu.memory_space<vmem>>, vector<1x32xf32>
    %c0_47 = arith.constant 0 : index
    %c0_48 = arith.constant 0 : index
    %82 = vector.load %arg15[%c0_47, %c0_48] : memref<32x16xf32, #tpu.memory_space<vmem>>, vector<32x16xf32>
    %cst_49 = arith.constant dense<0.000000e+00> : vector<96xf32>
    %83 = vector.multi_reduction <add>, %6, %cst_49 [0] : vector<4x96xf32> to vector<96xf32>
    %84 = vector.shape_cast %83 : vector<96xf32> to vector<1x96xf32>
    %cst_50 = arith.constant 4.000000e+00 : f32
    %85 = vector.broadcast %cst_50 : f32 to vector<1x96xf32>
    %86 = arith.divf %84, %85 : vector<1x96xf32>
    %87 = vector.broadcast %86 : vector<1x96xf32> to vector<4x96xf32>
    %88 = arith.subf %6, %87 : vector<4x96xf32>
    %89 = vector.broadcast %86 : vector<1x96xf32> to vector<4x96xf32>
    %90 = arith.subf %6, %89 : vector<4x96xf32>
    %91 = arith.mulf %88, %90 : vector<4x96xf32>
    %cst_51 = arith.constant dense<0.000000e+00> : vector<96xf32>
    %92 = vector.multi_reduction <add>, %91, %cst_51 [0] : vector<4x96xf32> to vector<96xf32>
    %93 = vector.shape_cast %92 : vector<96xf32> to vector<1x96xf32>
    %cst_52 = arith.constant 4.000000e+00 : f32
    %94 = vector.broadcast %cst_52 : f32 to vector<1x96xf32>
    %95 = arith.divf %93, %94 : vector<1x96xf32>
    %96 = vector.broadcast %86 : vector<1x96xf32> to vector<4x96xf32>
    %97 = arith.subf %6, %96 : vector<4x96xf32>
    %cst_53 = arith.constant 9.99999993E-9 : f32
    %98 = vector.broadcast %cst_53 : f32 to vector<1x96xf32>
    %99 = arith.addf %95, %98 : vector<1x96xf32>
    %100 = math.rsqrt %99 : vector<1x96xf32>
    %101 = vector.broadcast %100 : vector<1x96xf32> to vector<4x96xf32>
    %102 = arith.mulf %97, %101 : vector<4x96xf32>
    %103 = vector.broadcast %77 : vector<1x96xf32> to vector<4x96xf32>
    %104 = arith.mulf %102, %103 : vector<4x96xf32>
    %105 = vector.broadcast %78 : vector<1x96xf32> to vector<4x96xf32>
    %106 = arith.addf %104, %105 : vector<4x96xf32>
    %cst_54 = arith.constant dense<0.000000e+00> : vector<4x32xf32>
    %107 = tpu.matmul %106, %79, %cst_54 {dimension_numbers = #tpu.dot_dimension_numbers<[1], [0], [0], [1], [0, 0, 1, 1], [], []>} : vector<4x96xf32>, vector<96x32xf32>, vector<4x32xf32> -> vector<4x32xf32>
    %cst_55 = arith.constant dense<0.000000e+00> : vector<32xf32>
    %108 = vector.multi_reduction <add>, %107, %cst_55 [0] : vector<4x32xf32> to vector<32xf32>
    %109 = vector.shape_cast %108 : vector<32xf32> to vector<1x32xf32>
    %cst_56 = arith.constant 4.000000e+00 : f32
    %110 = vector.broadcast %cst_56 : f32 to vector<1x32xf32>
    %111 = arith.divf %109, %110 : vector<1x32xf32>
    %112 = vector.broadcast %111 : vector<1x32xf32> to vector<4x32xf32>
    %113 = arith.subf %107, %112 : vector<4x32xf32>
    %114 = vector.broadcast %111 : vector<1x32xf32> to vector<4x32xf32>
    %115 = arith.subf %107, %114 : vector<4x32xf32>
    %116 = arith.mulf %113, %115 : vector<4x32xf32>
    %cst_57 = arith.constant dense<0.000000e+00> : vector<32xf32>
    %117 = vector.multi_reduction <add>, %116, %cst_57 [0] : vector<4x32xf32> to vector<32xf32>
    %118 = vector.shape_cast %117 : vector<32xf32> to vector<1x32xf32>
    %cst_58 = arith.constant 4.000000e+00 : f32
    %119 = vector.broadcast %cst_58 : f32 to vector<1x32xf32>
    %120 = arith.divf %118, %119 : vector<1x32xf32>
    %121 = vector.broadcast %111 : vector<1x32xf32> to vector<4x32xf32>
    %122 = arith.subf %107, %121 : vector<4x32xf32>
    %cst_59 = arith.constant 9.99999993E-9 : f32
    %123 = vector.broadcast %cst_59 : f32 to vector<1x32xf32>
    %124 = arith.addf %120, %123 : vector<1x32xf32>
    %125 = math.rsqrt %124 : vector<1x32xf32>
    %126 = vector.broadcast %125 : vector<1x32xf32> to vector<4x32xf32>
    %127 = arith.mulf %122, %126 : vector<4x32xf32>
    %128 = vector.broadcast %80 : vector<1x32xf32> to vector<4x32xf32>
    %129 = arith.mulf %127, %128 : vector<4x32xf32>
    %130 = vector.broadcast %81 : vector<1x32xf32> to vector<4x32xf32>
    %131 = arith.addf %129, %130 : vector<4x32xf32>
    %132 = arith.mulf %131, %131 : vector<4x32xf32>
    %133 = arith.mulf %131, %132 : vector<4x32xf32>
    %cst_60 = arith.constant 4.471500e-02 : f32
    %134 = vector.broadcast %cst_60 : f32 to vector<4x32xf32>
    %135 = arith.mulf %134, %133 : vector<4x32xf32>
    %136 = arith.addf %131, %135 : vector<4x32xf32>
    %cst_61 = arith.constant 0.797884583 : f32
    %137 = vector.broadcast %cst_61 : f32 to vector<4x32xf32>
    %138 = arith.mulf %137, %136 : vector<4x32xf32>
    %139 = math.tanh %138 : vector<4x32xf32>
    %cst_62 = arith.constant 1.000000e+00 : f32
    %140 = vector.broadcast %cst_62 : f32 to vector<4x32xf32>
    %141 = arith.addf %140, %139 : vector<4x32xf32>
    %cst_63 = arith.constant 5.000000e-01 : f32
    %142 = vector.broadcast %cst_63 : f32 to vector<4x32xf32>
    %143 = arith.mulf %142, %141 : vector<4x32xf32>
    %144 = arith.mulf %131, %143 : vector<4x32xf32>
    %cst_64 = arith.constant dense<0.000000e+00> : vector<4x16xf32>
    %145 = tpu.matmul %144, %82, %cst_64 {dimension_numbers = #tpu.dot_dimension_numbers<[1], [0], [0], [1], [0, 0, 1, 1], [], []>} : vector<4x32xf32>, vector<32x16xf32>, vector<4x16xf32> -> vector<4x16xf32>
    %146 = tpu.concatenate %76, %145 in 1 : vector<4x16xf32>, vector<4x16xf32> -> vector<4x32xf32>
    %c0_65 = arith.constant 0 : index
    %c0_66 = arith.constant 0 : index
    %147 = vector.load %arg16[%c0_65, %c0_66] : memref<4x32xf32, #tpu.memory_space<vmem>>, vector<4x32xf32>
    tpu.vector_store %arg16[%c0_65, %c0_66], %146 {strides = array<i32>} : memref<4x32xf32, #tpu.memory_space<vmem>>, vector<4x32xf32>,
    return
  }
}

</mosaic_0001>

<llo_original>
// kernel: comprehension_module_forward.1
$region0: #{comprehension_module_forward.1}
  #allocation0 [shape = 'u32[]', space=smem, size = 0x4, offset = 0x4, fixed_abs, tag = 'smem constant byte address 0x4 - core index']
  #allocation1 [shape = 'u32[144,128]{1,0:T(1,128)}', space=vmem, size = 0x12000, scoped, tag = 'internal scratch']
  %s0 = inlined_call_operand.vmem [shape: f32[4,96], index: 0, kind: input, shape index: {}]
  %s1 = inlined_call_operand.hbm [shape: f32[4,8,32], index: 1, kind: input, shape index: {}]
  %s2 = inlined_call_operand.hbm [shape: f32[4,8,32], index: 2, kind: input, shape index: {}]
  %s3 = inlined_call_operand.hbm [shape: f32[4,8,32], index: 3, kind: input, shape index: {}]
  %s4 = inlined_call_operand.vmem [shape: f32[1,96], index: 4, kind: input, shape index: {}, may-alias: {4,10}]
  %s5 = inlined_call_operand.vmem [shape: f32[1,96], index: 5, kind: input, shape index: {}, may-alias: {5,11}]
  %s6 = inlined_call_operand.hbm [shape: f32[96,32], index: 6, kind: input, shape index: {}]
  %s7 = inlined_call_operand.vmem [shape: f32[1,32], index: 7, kind: input, shape index: {}, may-alias: {7,13}]
  %s8 = inlined_call_operand.vmem [shape: f32[1,32], index: 8, kind: input, shape index: {}, may-alias: {8,14}]
  %s9 = inlined_call_operand.hbm [shape: f32[32,16], index: 9, kind: input, shape index: {}]
  %s10 = inlined_call_operand.vmem [shape: f32[1,96], index: 10, kind: input, shape index: {}, may-alias: {4,10}]
  %s11 = inlined_call_operand.vmem [shape: f32[1,96], index: 11, kind: input, shape index: {}, may-alias: {5,11}]
  %s12 = inlined_call_operand.hbm [shape: f32[96,32], index: 12, kind: input, shape index: {}]
  %s13 = inlined_call_operand.vmem [shape: f32[1,32], index: 13, kind: input, shape index: {}, may-alias: {7,13}]
  %s14 = inlined_call_operand.vmem [shape: f32[1,32], index: 14, kind: input, shape index: {}, may-alias: {8,14}]
  %s15 = inlined_call_operand.vmem [shape: f32[32,16], index: 15, kind: input, shape index: {}]
  %s16 = inlined_call_operand.vmem [shape: f32[4,32], index: 16, kind: output, shape index: {}]
  %s17 = sld [smem:[#allocation0]]
  $region98: #{comprehension_module_forward.1} parent=0
    _
  %s19 = ssub.s32 1, %s17
  %s20 = scalar_select 0, %s19, %s17
  $region1: #{comprehension_module_forward.1} parent=0
    #allocation2 [shape = 'u8[16384]{0}', space=vmem, size = 0x4000, scoped, tag = 'input window, operand 1, single buffered']
    #allocation3 [shape = 's32[1]{0}', space=sflag, size = 0x4, scoped, tag = 'scoped memory for comprehension_module_forward.1']
    #allocation4 [shape = 'u8[16384]{0}', space=vmem, size = 0x4000, scoped, tag = 'input window, operand 2, single buffered']
    #allocation5 [shape = 's32[1]{0}', space=sflag, size = 0x4, scoped, tag = 'scoped memory for comprehension_module_forward.1']
    #allocation6 [shape = 'u8[16384]{0}', space=vmem, size = 0x4000, scoped, tag = 'input window, operand 3, single buffered']
    #allocation7 [shape = 'u8[49152]{0}', space=vmem, size = 0xc000, scoped, tag = 'input window, operand 6, single buffered']
    #allocation8 [shape = 's32[1]{0}', space=sflag, size = 0x4, scoped, tag = 'scoped memory for comprehension_module_forward.1']
    #allocation9 [shape = 'u8[16384]{0}', space=vmem, size = 0x4000, scoped, tag = 'input window, operand 9, single buffered']
    #allocation10 [shape = 'u8[49152]{0}', space=vmem, size = 0xc000, scoped, tag = 'input window, operand 12, single buffered']
    #allocation11 [shape = 's32[1]{0}', space=sflag, size = 0x4, scoped, tag = 'scoped memory for comprehension_module_forward.1']
    %21 = vsyncpa [#allocation3], 0
    %22 = vsyncpa [#allocation5], 0
    %23 = vsyncpa [#allocation8], 0
    %24 = vsyncpa [#allocation11], 0
    // Predicated region
    $region2: #{comprehension_module_forward.1} parent=1 // pred_check
      _
    $region3: #{comprehension_module_forward.1} parent=1 // pred_check_branch
      %26 = sbr.rel (0) target = $region5
    $region4: #{comprehension_module_forward.1} parent=1 // pred_region
      _
    $region5: #{comprehension_module_forward.1} parent=1 // pred_fallthru
      _
    // Predicated region
    $region6: #{comprehension_module_forward.1} parent=1 // pred_check
      _
    $region7: #{comprehension_module_forward.1} parent=1 // pred_check_branch
      %28 = sbr.rel (0) target = $region9
    $region8: #{comprehension_module_forward.1} parent=1 // pred_region
      %s30 = ssub.s32 512, 512
      %31 = vsyncadd [#allocation3], %s30
      %s32 = sshll.u32 [#allocation2], 4
      %s33 = int_to_ptr.vmem [resolvable:$true] %s32
      %38 = dma.hbm_to_vmem [thread:$0]  %s1, 512, %s33, [#allocation3], 128, 128, 8
    $region9: #{comprehension_module_forward.1} parent=1 // pred_fallthru
      _
    // Predicated region
    $region10: #{comprehension_module_forward.1} parent=1 // pred_check
      _
    $region11: #{comprehension_module_forward.1} parent=1 // pred_check_branch
      %40 = sbr.rel (0) target = $region13
    $region12: #{comprehension_module_forward.1} parent=1 // pred_region
      %s42 = ssub.s32 512, 512
      %43 = vsyncadd [#allocation5], %s42
      %s44 = sshll.u32 [#allocation4], 4
      %s45 = int_to_ptr.vmem [resolvable:$true] %s44
      %50 = dma.hbm_to_vmem [thread:$0]  %s2, 512, %s45, [#allocation5], 128, 128, 8
    $region13: #{comprehension_module_forward.1} parent=1 // pred_fallthru
      _
    // Predicated region
    $region14: #{comprehension_module_forward.1} parent=1 // pred_check
      _
    $region15: #{comprehension_module_forward.1} parent=1 // pred_check_branch
      %52 = sbr.rel (0) target = $region17
    $region16: #{comprehension_module_forward.1} parent=1 // pred_region
      %s54 = ssub.s32 512, 512
      %55 = vsyncadd [#allocation5], %s54
      %s56 = sshll.u32 [#allocation6], 4
      %s57 = int_to_ptr.vmem [resolvable:$true] %s56
      %62 = dma.hbm_to_vmem [thread:$0]  %s3, 512, %s57, [#allocation5], 128, 128, 8
    $region17: #{comprehension_module_forward.1} parent=1 // pred_fallthru
      _
    // Predicated region
    $region18: #{comprehension_module_forward.1} parent=1 // pred_check
      _
    $region19: #{comprehension_module_forward.1} parent=1 // pred_check_branch
      %64 = sbr.rel (0) target = $region21
    $region20: #{comprehension_module_forward.1} parent=1 // pred_region
      _
    $region21: #{comprehension_module_forward.1} parent=1 // pred_fallthru
      _
    // Predicated region
    $region22: #{comprehension_module_forward.1} parent=1 // pred_check
      _
    $region23: #{comprehension_module_forward.1} parent=1 // pred_check_branch
      %66 = sbr.rel (0) target = $region25
    $region24: #{comprehension_module_forward.1} parent=1 // pred_region
      _
    $region25: #{comprehension_module_forward.1} parent=1 // pred_fallthru
      _
    // Predicated region
    $region26: #{comprehension_module_forward.1} parent=1 // pred_check
      _
    $region27: #{comprehension_module_forward.1} parent=1 // pred_check_branch
      %68 = sbr.rel (0) target = $region29
    $region28: #{comprehension_module_forward.1} parent=1 // pred_region
      %s70 = ssub.s32 1536, 1536
      %71 = vsyncadd [#allocation8], %s70
      %s72 = sshll.u32 [#allocation7], 4
      %s73 = int_to_ptr.vmem [resolvable:$true] %s72
      %78 = dma.hbm_to_vmem [thread:$0]  %s6, 1536, %s73, [#allocation8], 128, 128, 8
    $region29: #{comprehension_module_forward.1} parent=1 // pred_fallthru
      _
    // Predicated region
    $region30: #{comprehension_module_forward.1} parent=1 // pred_check
      _
    $region31: #{comprehension_module_forward.1} parent=1 // pred_check_branch
      %80 = sbr.rel (0) target = $region33
    $region32: #{comprehension_module_forward.1} parent=1 // pred_region
      _
    $region33: #{comprehension_module_forward.1} parent=1 // pred_fallthru
      _
    // Predicated region
    $region34: #{comprehension_module_forward.1} parent=1 // pred_check
      _
    $region35: #{comprehension_module_forward.1} parent=1 // pred_check_branch
      %82 = sbr.rel (0) target = $region37
    $region36: #{comprehension_module_forward.1} parent=1 // pred_region
      _
    $region37: #{comprehension_module_forward.1} parent=1 // pred_fallthru
      _
    // Predicated region
    $region38: #{comprehension_module_forward.1} parent=1 // pred_check
      _
    $region39: #{comprehension_module_forward.1} parent=1 // pred_check_branch
      %84 = sbr.rel (0) target = $region41
    $region40: #{comprehension_module_forward.1} parent=1 // pred_region
      %s86 = ssub.s32 512, 512
      %87 = vsyncadd [#allocation8], %s86
      %s88 = sshll.u32 [#allocation9], 4
      %s89 = int_to_ptr.vmem [resolvable:$true] %s88
      %94 = dma.hbm_to_vmem [thread:$0]  %s9, 512, %s89, [#allocation8], 128, 128, 8
    $region41: #{comprehension_module_forward.1} parent=1 // pred_fallthru
      _
    // Predicated region
    $region42: #{comprehension_module_forward.1} parent=1 // pred_check
      _
    $region43: #{comprehension_module_forward.1} parent=1 // pred_check_branch
      %96 = sbr.rel (0) target = $region45
    $region44: #{comprehension_module_forward.1} parent=1 // pred_region
      _
    $region45: #{comprehension_module_forward.1} parent=1 // pred_fallthru
      _
    // Predicated region
    $region46: #{comprehension_module_forward.1} parent=1 // pred_check
      _
    $region47: #{comprehension_module_forward.1} parent=1 // pred_check_branch
      %98 = sbr.rel (0) target = $region49
    $region48: #{comprehension_module_forward.1} parent=1 // pred_region
      _
    $region49: #{comprehension_module_forward.1} parent=1 // pred_fallthru
      _
    // Predicated region
    $region50: #{comprehension_module_forward.1} parent=1 // pred_check
      _
    $region51: #{comprehension_module_forward.1} parent=1 // pred_check_branch
      %100 = sbr.rel (0) target = $region53
    $region52: #{comprehension_module_forward.1} parent=1 // pred_region
      %s102 = ssub.s32 1536, 1536
      %103 = vsyncadd [#allocation11], %s102
      %s104 = sshll.u32 [#allocation10], 4
      %s105 = int_to_ptr.vmem [resolvable:$true] %s104
      %110 = dma.hbm_to_vmem [thread:$0]  %s12, 1536, %s105, [#allocation11], 128, 128, 8
    $region53: #{comprehension_module_forward.1} parent=1 // pred_fallthru
      _
    // Predicated region
    $region54: #{comprehension_module_forward.1} parent=1 // pred_check
      _
    $region55: #{comprehension_module_forward.1} parent=1 // pred_check_branch
      %112 = sbr.rel (0) target = $region57
    $region56: #{comprehension_module_forward.1} parent=1 // pred_region
      _
    $region57: #{comprehension_module_forward.1} parent=1 // pred_fallthru
      _
    // Predicated region
    $region58: #{comprehension_module_forward.1} parent=1 // pred_check
      _
    $region59: #{comprehension_module_forward.1} parent=1 // pred_check_branch
      %114 = sbr.rel (0) target = $region61
    $region60: #{comprehension_module_forward.1} parent=1 // pred_region
      _
    $region61: #{comprehension_module_forward.1} parent=1 // pred_fallthru
      _
    // Predicated region
    $region62: #{comprehension_module_forward.1} parent=1 // pred_check
      _
    $region63: #{comprehension_module_forward.1} parent=1 // pred_check_branch
      %116 = sbr.rel (0) target = $region65
    $region64: #{comprehension_module_forward.1} parent=1 // pred_region
      _
    $region65: #{comprehension_module_forward.1} parent=1 // pred_fallthru
      _
    // Predicated region
    $region66: #{comprehension_module_forward.1} parent=1 // pred_check
      _
    $region67: #{comprehension_module_forward.1} parent=1 // pred_check_branch
      %118 = sbr.rel (0) target = $region69
    $region68: #{comprehension_module_forward.1} parent=1 // pred_region
      %119 = dma.done [#allocation3], 512
    $region69: #{comprehension_module_forward.1} parent=1 // pred_fallthru
      _
    // Predicated region
    $region70: #{comprehension_module_forward.1} parent=1 // pred_check
      _
    $region71: #{comprehension_module_forward.1} parent=1 // pred_check_branch
      %121 = sbr.rel (0) target = $region73
    $region72: #{comprehension_module_forward.1} parent=1 // pred_region
      %122 = dma.done [#allocation5], 512
    $region73: #{comprehension_module_forward.1} parent=1 // pred_fallthru
      _
    // Predicated region
    $region74: #{comprehension_module_forward.1} parent=1 // pred_check
      _
    $region75: #{comprehension_module_forward.1} parent=1 // pred_check_branch
      %124 = sbr.rel (0) target = $region77
    $region76: #{comprehension_module_forward.1} parent=1 // pred_region
      %125 = dma.done [#allocation5], 512
    $region77: #{comprehension_module_forward.1} parent=1 // pred_fallthru
      _
    // Predicated region
    $region78: #{comprehension_module_forward.1} parent=1 // pred_check
      _
    $region79: #{comprehension_module_forward.1} parent=1 // pred_check_branch
      %127 = sbr.rel (0) target = $region81
    $region80: #{comprehension_module_forward.1} parent=1 // pred_region
      %128 = dma.done [#allocation8], 1536
    $region81: #{comprehension_module_forward.1} parent=1 // pred_fallthru
      _
    // Predicated region
    $region82: #{comprehension_module_forward.1} parent=1 // pred_check
      _
    $region83: #{comprehension_module_forward.1} parent=1 // pred_check_branch
      %130 = sbr.rel (0) target = $region85
    $region84: #{comprehension_module_forward.1} parent=1 // pred_region
      %131 = dma.done [#allocation8], 512
    $region85: #{comprehension_module_forward.1} parent=1 // pred_fallthru
      _
    // Predicated region
    $region86: #{comprehension_module_forward.1} parent=1 // pred_check
      _
    $region87: #{comprehension_module_forward.1} parent=1 // pred_check_branch
      %133 = sbr.rel (0) target = $region89
    $region88: #{comprehension_module_forward.1} parent=1 // pred_region
      %134 = dma.done [#allocation11], 1536
    $region89: #{comprehension_module_forward.1} parent=1 // pred_fallthru
      _
    %v135 = vld [vmem:[#allocation2] sm:$0x1]
    %v136 = vld [vmem:[#allocation2 + $0x8] sm:$0x1]
    %v137 = vld [vmem:[#allocation2 + $0x10] sm:$0x1]
    %v138 = vld [vmem:[#allocation2 + $0x18] sm:$0x1]
    %v139 = vld [vmem:[#allocation4] sm:$0x1]
    %v140 = vld [vmem:[#allocation4 + $0x8] sm:$0x1]
    %v141 = vld [vmem:[#allocation4 + $0x10] sm:$0x1]
    %v142 = vld [vmem:[#allocation4 + $0x18] sm:$0x1]
    %v143 = vld [vmem:[#allocation6] sm:$0x1]
    %v144 = vld [vmem:[#allocation6 + $0x8] sm:$0x1]
    %v145 = vld [vmem:[#allocation6 + $0x10] sm:$0x1]
    %v146 = vld [vmem:[#allocation6 + $0x18] sm:$0x1]
    %v151 = vrot.slane %v136, 7
    %vm152 = vcmask 1041409
    %v153 = vsel %vm152, %v151, %v135
    %v154 = vrot.slane %v137, 6
    %vm155 = vcmask 1042434
    %v156 = vsel %vm155, %v154, %v153
    %v157 = vrot.slane %v138, 5
    %vm158 = vcmask 1043459
    %v159 = vsel %vm158, %v157, %v156
    %v165 = vrot.slane %v140, 7
    %v166 = vsel %vm152, %v165, %v139
    %v167 = vrot.slane %v141, 6
    %v168 = vsel %vm155, %v167, %v166
    %v169 = vrot.slane %v142, 5
    %v170 = vsel %vm158, %v169, %v168
    %171 = vrot.lane.b32.xlu0 %v170, 32
    %v172 = vpop.permute.xlu0 %171
    %v178 = vrot.slane %v144, 7
    %v179 = vsel %vm152, %v178, %v143
    %v180 = vrot.slane %v145, 6
    %v181 = vsel %vm155, %v180, %v179
    %v182 = vrot.slane %v146, 5
    %v183 = vsel %vm158, %v182, %v181
    %184 = vrot.lane.b32.xlu0 %v183, 64
    %v185 = vpop.permute.xlu0 %184
    %vm187 = vcmask 261120
    %v188 = vsel %vm187, %v159, %v172
    %vm189 = vcmask 523264
    %v190 = vsel %vm189, %v188, %v185
    %v191 = vld [vmem:[%s0] sm:$0xf]
    %v192 = vld [vmem:[%s4] sm:$0x1]
    %v193 = vld [vmem:[%s5] sm:$0x1]
    %v194 = vld [vmem:[#allocation7] sm:$0xff]
    %v195 = vld [vmem:[#allocation7 + $0x8] sm:$0xff]
    %v196 = vld [vmem:[#allocation7 + $0x10] sm:$0xff]
    %v197 = vld [vmem:[#allocation7 + $0x18] sm:$0xff]
    %v198 = vld [vmem:[#allocation7 + $0x20] sm:$0xff]
    %v199 = vld [vmem:[#allocation7 + $0x28] sm:$0xff]
    %v200 = vld [vmem:[#allocation7 + $0x30] sm:$0xff]
    %v201 = vld [vmem:[#allocation7 + $0x38] sm:$0xff]
    %v202 = vld [vmem:[#allocation7 + $0x40] sm:$0xff]
    %v203 = vld [vmem:[#allocation7 + $0x48] sm:$0xff]
    %v204 = vld [vmem:[#allocation7 + $0x50] sm:$0xff]
    %v205 = vld [vmem:[#allocation7 + $0x58] sm:$0xff]
    %v206 = vld [vmem:[%s7] sm:$0x1]
    %v207 = vld [vmem:[%s8] sm:$0x1]
    %v208 = vld [vmem:[#allocation9] sm:$0xff]
    %v209 = vld [vmem:[#allocation9 + $0x8] sm:$0xff]
    %v210 = vld [vmem:[#allocation9 + $0x10] sm:$0xff]
    %v211 = vld [vmem:[#allocation9 + $0x18] sm:$0xff]
    %vm212 = vcmask 781312
    %v213 = vsel %vm212, %v191, 0.0
    %v214 = vrot.slane %v213, 4
    %v215 = vadd.f32 %v213, %v214
    %v216 = vrot.slane %v215, 2
    %v217 = vadd.f32 %v215, %v216
    %v218 = vrot.slane %v217, 1
    %v219 = vadd.f32 %v217, %v218
    %v220 = vrcp.pop 4.0
    %v221 = vmul.f32 %v219, %v220
    %v222 = vsub.f32 %v191, %v221
    %v223 = vmul.f32 %v222, %v222
    %v224 = vsel %vm212, %v223, 0.0
    %v225 = vrot.slane %v224, 4
    %v226 = vadd.f32 %v224, %v225
    %v227 = vrot.slane %v226, 2
    %v228 = vadd.f32 %v226, %v227
    %v229 = vrot.slane %v228, 1
    %v230 = vadd.f32 %v228, %v229
    %v231 = vmul.f32 %v230, %v220
    %v232 = vadd.f32 %v231, 1e-08
    %v233 = vrsqrt.pop %v232
    %v234 = vmul.f32 %v222, %v233
    %v236 = vlaneseq
    %v237 = vshrl.u32 %v236, 7
    %v238 = vsub.s32 0, %v237
    %v239 = vrot.slane %v192, %v238
    %v241 = vmul.f32 %v234, %v239
    %v243 = vlaneseq
    %v244 = vshrl.u32 %v243, 7
    %v245 = vsub.s32 0, %v244
    %v246 = vrot.slane %v193, %v245
    %v248 = vadd.f32 %v241, %v246
    %vm249 = vcmask 785408
    %v251 = vsel %vm249, %v248, 0
    %253 = vmatprep.subr.mxu0 0.0
    %254 = vmatpush1.msra.mxu0 %v194
    %255 = vmatprep.subr.mxu0 0.0
    %256 = vmatpush1.msra.mxu0 %v195
    %257 = vmatprep.subr.mxu0 0.0
    %258 = vmatpush1.msra.mxu0 %v196
    %259 = vmatprep.subr.mxu0 0.0
    %260 = vmatpush1.msra.mxu0 %v197
    %261 = vmatprep.subr.mxu0 0.0
    %262 = vmatpush1.msra.mxu0 %v198
    %263 = vmatprep.subr.mxu0 0.0
    %264 = vmatpush1.msra.mxu0 %v199
    %265 = vmatprep.subr.mxu0 0.0
    %266 = vmatpush1.msra.mxu0 %v200
    %267 = vmatprep.subr.mxu0 0.0
    %268 = vmatpush1.msra.mxu0 %v201
    %269 = vmatprep.subr.mxu0 0.0
    %270 = vmatpush1.msra.mxu0 %v202
    %271 = vmatprep.subr.mxu0 0.0
    %272 = vmatpush1.msra.mxu0 %v203
    %273 = vmatprep.subr.mxu0 0.0
    %274 = vmatpush1.msra.mxu0 %v204
    %275 = vmatprep.subr.mxu0 0.0
    %276 = vmatpush1.msra.mxu0 %v205
    %277 = vmatprep.subr.mxu0 0.0
    %278 = vmatpush1.msra.mxu0 0.0
    %279 = vmatprep.subr.mxu0 0.0
    %280 = vmatpush1.msra.mxu0 0.0
    %281 = vmatprep.subr.mxu0 0.0
    %282 = vmatpush1.msra.mxu0 0.0
    %283 = vmatprep.subr.mxu0 0.0
    %284 = vmatpush1.msra.mxu0 0.0
    %285 = vmatprep.subr.mxu0 0.0
    %286 = vmatpush1.msra.mxu0 0.0
    %287 = vmatprep.subr.mxu0 0.0
    %288 = vmatpush1.msra.mxu0 0.0
    %289 = vmatprep.subr.mxu0 0.0
    %290 = vmatpush1.msra.mxu0 0.0
    %291 = vmatprep.subr.mxu0 0.0
    %292 = vmatpush1.msra.mxu0 0.0
    %293 = vmatprep.subr.mxu0 0.0
    %294 = vmatpush1.msra.mxu0 0.0
    %295 = vmatprep.subr.mxu0 0.0
    %296 = vmatpush1.msra.mxu0 0.0
    %297 = vmatprep.subr.mxu0 0.0
    %298 = vmatpush1.msra.mxu0 0.0
    %299 = vmatprep.subr.mxu0 0.0
    %300 = vmatpush1.msra.mxu0 0.0
    %301 = vmatprep.subr.mxu0 0.0
    %302 = vmatpush1.msra.mxu0 0.0
    %303 = vmatprep.subr.mxu0 0.0
    %304 = vmatpush1.msra.mxu0 0.0
    %305 = vmatprep.subr.mxu0 0.0
    %306 = vmatpush1.msra.mxu0 0.0
    %307 = vmatprep.subr.mxu0 0.0
    %308 = vmatpush1.msra.mxu0 0.0
    %309 = vmatprep.subr.mxu0 0.0
    %310 = vmatpush1.msra.mxu0 0.0
    %311 = vmatprep.subr.mxu0 0.0
    %312 = vmatpush1.msra.mxu0 0.0
    %313 = vmatprep.subr.mxu0 0.0
    %314 = vmatpush1.msra.mxu0 0.0
    %315 = vmatprep.subr.mxu0 0.0
    %316 = vmatpush1.msra.mxu0 0.0
    %317 = vmatprep.mubr.f32.mxu0 0.0
    %318 = vmatmul.mubr.f32.gmra.mrb[0].mxu0 %v251
    %v319 = vpop.f32.mrb[0].mxu0
    %v320 = vadd.f32 0.0, %v319
    %v321 = vpop.f32.mrb[0].mxu0
    %322 = vdwg.mxu0
    %vm323 = vcmask 257024
    %v324 = vsel %vm323, %v320, 0.0
    %v325 = vrot.slane %v324, 4
    %v326 = vadd.f32 %v324, %v325
    %v327 = vrot.slane %v326, 2
    %v328 = vadd.f32 %v326, %v327
    %v329 = vrot.slane %v328, 1
    %v330 = vadd.f32 %v328, %v329
    %v331 = vmul.f32 %v330, %v220
    %v332 = vsub.f32 %v320, %v331
    %v333 = vmul.f32 %v332, %v332
    %v334 = vsel %vm323, %v333, 0.0
    %v335 = vrot.slane %v334, 4
    %v336 = vadd.f32 %v334, %v335
    %v337 = vrot.slane %v336, 2
    %v338 = vadd.f32 %v336, %v337
    %v339 = vrot.slane %v338, 1
    %v340 = vadd.f32 %v338, %v339
    %v341 = vmul.f32 %v340, %v220
    %v342 = vadd.f32 %v341, 1e-08
    %v343 = vrsqrt.pop %v342
    %v344 = vmul.f32 %v332, %v343
    %v346 = vlaneseq
    %v347 = vshrl.u32 %v346, 7
    %v348 = vsub.s32 0, %v347
    %v349 = vrot.slane %v206, %v348
    %v351 = vmul.f32 %v344, %v349
    %v353 = vlaneseq
    %v354 = vshrl.u32 %v353, 7
    %v355 = vsub.s32 0, %v354
    %v356 = vrot.slane %v207, %v355
    %v358 = vadd.f32 %v351, %v356
    %v359 = vmul.f32 %v358, %v358
    %v360 = vmul.f32 %v358, %v359
    %v361 = vmul.f32 %v360, 0.044715
    %v362 = vadd.f32 %v358, %v361
    %v363 = vmul.f32 %v362, 0.7978846
    %v364 = vtanh.pop %v363
    %v365 = vadd.f32 %v364, 1.0
    %v366 = vmul.f32 %v365, 0.5
    %v367 = vmul.f32 %v358, %v366
    %v369 = vsel %vm187, %v367, 0
    %371 = vmatprep.subr.mxu0 0.0
    %372 = vmatpush1.msra.mxu0 %v208
    %373 = vmatprep.subr.mxu0 0.0
    %374 = vmatpush1.msra.mxu0 %v209
    %375 = vmatprep.subr.mxu0 0.0
    %376 = vmatpush1.msra.mxu0 %v210
    %377 = vmatprep.subr.mxu0 0.0
    %378 = vmatpush1.msra.mxu0 %v211
    %379 = vmatprep.subr.mxu0 0.0
    %380 = vmatpush1.msra.mxu0 0.0
    %381 = vmatprep.subr.mxu0 0.0
    %382 = vmatpush1.msra.mxu0 0.0
    %383 = vmatprep.subr.mxu0 0.0
    %384 = vmatpush1.msra.mxu0 0.0
    %385 = vmatprep.subr.mxu0 0.0
    %386 = vmatpush1.msra.mxu0 0.0
    %387 = vmatprep.subr.mxu0 0.0
    %388 = vmatpush1.msra.mxu0 0.0
    %389 = vmatprep.subr.mxu0 0.0
    %390 = vmatpush1.msra.mxu0 0.0
    %391 = vmatprep.subr.mxu0 0.0
    %392 = vmatpush1.msra.mxu0 0.0
    %393 = vmatprep.subr.mxu0 0.0
    %394 = vmatpush1.msra.mxu0 0.0
    %395 = vmatprep.subr.mxu0 0.0
    %396 = vmatpush1.msra.mxu0 0.0
    %397 = vmatprep.subr.mxu0 0.0
    %398 = vmatpush1.msra.mxu0 0.0
    %399 = vmatprep.subr.mxu0 0.0
    %400 = vmatpush1.msra.mxu0 0.0
    %401 = vmatprep.subr.mxu0 0.0
    %402 = vmatpush1.msra.mxu0 0.0
    %403 = vmatprep.subr.mxu0 0.0
    %404 = vmatpush1.msra.mxu0 0.0
    %405 = vmatprep.subr.mxu0 0.0
    %406 = vmatpush1.msra.mxu0 0.0
    %407 = vmatprep.subr.mxu0 0.0
    %408 = vmatpush1.msra.mxu0 0.0
    %409 = vmatprep.subr.mxu0 0.0
    %410 = vmatpush1.msra.mxu0 0.0
    %411 = vmatprep.subr.mxu0 0.0
    %412 = vmatpush1.msra.mxu0 0.0
    %413 = vmatprep.subr.mxu0 0.0
    %414 = vmatpush1.msra.mxu0 0.0
    %415 = vmatprep.subr.mxu0 0.0
    %416 = vmatpush1.msra.mxu0 0.0
    %417 = vmatprep.subr.mxu0 0.0
    %418 = vmatpush1.msra.mxu0 0.0
    %419 = vmatprep.subr.mxu0 0.0
    %420 = vmatpush1.msra.mxu0 0.0
    %421 = vmatprep.subr.mxu0 0.0
    %422 = vmatpush1.msra.mxu0 0.0
    %423 = vmatprep.subr.mxu0 0.0
    %424 = vmatpush1.msra.mxu0 0.0
    %425 = vmatprep.subr.mxu0 0.0
    %426 = vmatpush1.msra.mxu0 0.0
    %427 = vmatprep.subr.mxu0 0.0
    %428 = vmatpush1.msra.mxu0 0.0
    %429 = vmatprep.subr.mxu0 0.0
    %430 = vmatpush1.msra.mxu0 0.0
    %431 = vmatprep.subr.mxu0 0.0
    %432 = vmatpush1.msra.mxu0 0.0
    %433 = vmatprep.subr.mxu0 0.0
    %434 = vmatpush1.msra.mxu0 0.0
    %435 = vmatprep.mubr.f32.mxu0 0.0
    %436 = vmatmul.mubr.f32.gmra.mrb[0].mxu0 %v369
    %v437 = vpop.f32.mrb[0].mxu0
    %v438 = vadd.f32 0.0, %v437
    %v439 = vpop.f32.mrb[0].mxu0
    %440 = vdwg.mxu0
    %v441 = vld [vmem:[%s10] sm:$0x1]
    %v442 = vld [vmem:[%s11] sm:$0x1]
    %v443 = vld [vmem:[#allocation10] sm:$0xff]
    %v444 = vld [vmem:[#allocation10 + $0x8] sm:$0xff]
    %v445 = vld [vmem:[#allocation10 + $0x10] sm:$0xff]
    %v446 = vld [vmem:[#allocation10 + $0x18] sm:$0xff]
    %v447 = vld [vmem:[#allocation10 + $0x20] sm:$0xff]
    %v448 = vld [vmem:[#allocation10 + $0x28] sm:$0xff]
    %v449 = vld [vmem:[#allocation10 + $0x30] sm:$0xff]
    %v450 = vld [vmem:[#allocation10 + $0x38] sm:$0xff]
    %v451 = vld [vmem:[#allocation10 + $0x40] sm:$0xff]
    %v452 = vld [vmem:[#allocation10 + $0x48] sm:$0xff]
    %v453 = vld [vmem:[#allocation10 + $0x50] sm:$0xff]
    %v454 = vld [vmem:[#allocation10 + $0x58] sm:$0xff]
    %v455 = vld [vmem:[%s13] sm:$0x1]
    %v456 = vld [vmem:[%s14] sm:$0x1]
    %v457 = vld [vmem:[%s15] sm:$0xff]
    %v458 = vld [vmem:[%s15 + $0x8] sm:$0xff]
    %v459 = vld [vmem:[%s15 + $0x10] sm:$0xff]
    %v460 = vld [vmem:[%s15 + $0x18] sm:$0xff]
    %v461 = vsel %vm212, %v190, 0.0
    %v462 = vrot.slane %v461, 4
    %v463 = vadd.f32 %v461, %v462
    %v464 = vrot.slane %v463, 2
    %v465 = vadd.f32 %v463, %v464
    %v466 = vrot.slane %v465, 1
    %v467 = vadd.f32 %v465, %v466
    %v468 = vmul.f32 %v467, %v220
    %v469 = vsub.f32 %v190, %v468
    %v470 = vmul.f32 %v469, %v469
    %v471 = vsel %vm212, %v470, 0.0
    %v472 = vrot.slane %v471, 4
    %v473 = vadd.f32 %v471, %v472
    %v474 = vrot.slane %v473, 2
    %v475 = vadd.f32 %v473, %v474
    %v476 = vrot.slane %v475, 1
    %v477 = vadd.f32 %v475, %v476
    %v478 = vmul.f32 %v477, %v220
    %v479 = vadd.f32 %v478, 1e-08
    %v480 = vrsqrt.pop %v479
    %v481 = vmul.f32 %v469, %v480
    %v483 = vlaneseq
    %v484 = vshrl.u32 %v483, 7
    %v485 = vsub.s32 0, %v484
    %v486 = vrot.slane %v441, %v485
    %v488 = vmul.f32 %v481, %v486
    %v490 = vlaneseq
    %v491 = vshrl.u32 %v490, 7
    %v492 = vsub.s32 0, %v491
    %v493 = vrot.slane %v442, %v492
    %v495 = vadd.f32 %v488, %v493
    %v497 = vsel %vm249, %v495, 0
    %499 = vmatprep.subr.mxu0 0.0
    %500 = vmatpush1.msra.mxu0 %v443
    %501 = vmatprep.subr.mxu0 0.0
    %502 = vmatpush1.msra.mxu0 %v444
    %503 = vmatprep.subr.mxu0 0.0
    %504 = vmatpush1.msra.mxu0 %v445
    %505 = vmatprep.subr.mxu0 0.0
    %506 = vmatpush1.msra.mxu0 %v446
    %507 = vmatprep.subr.mxu0 0.0
    %508 = vmatpush1.msra.mxu0 %v447
    %509 = vmatprep.subr.mxu0 0.0
    %510 = vmatpush1.msra.mxu0 %v448
    %511 = vmatprep.subr.mxu0 0.0
    %512 = vmatpush1.msra.mxu0 %v449
    %513 = vmatprep.subr.mxu0 0.0
    %514 = vmatpush1.msra.mxu0 %v450
    %515 = vmatprep.subr.mxu0 0.0
    %516 = vmatpush1.msra.mxu0 %v451
    %517 = vmatprep.subr.mxu0 0.0
    %518 = vmatpush1.msra.mxu0 %v452
    %519 = vmatprep.subr.mxu0 0.0
    %520 = vmatpush1.msra.mxu0 %v453
    %521 = vmatprep.subr.mxu0 0.0
    %522 = vmatpush1.msra.mxu0 %v454
    %523 = vmatprep.subr.mxu0 0.0
    %524 = vmatpush1.msra.mxu0 0.0
    %525 = vmatprep.subr.mxu0 0.0
    %526 = vmatpush1.msra.mxu0 0.0
    %527 = vmatprep.subr.mxu0 0.0
    %528 = vmatpush1.msra.mxu0 0.0
    %529 = vmatprep.subr.mxu0 0.0
    %530 = vmatpush1.msra.mxu0 0.0
    %531 = vmatprep.subr.mxu0 0.0
    %532 = vmatpush1.msra.mxu0 0.0
    %533 = vmatprep.subr.mxu0 0.0
    %534 = vmatpush1.msra.mxu0 0.0
    %535 = vmatprep.subr.mxu0 0.0
    %536 = vmatpush1.msra.mxu0 0.0
    %537 = vmatprep.subr.mxu0 0.0
    %538 = vmatpush1.msra.mxu0 0.0
    %539 = vmatprep.subr.mxu0 0.0
    %540 = vmatpush1.msra.mxu0 0.0
    %541 = vmatprep.subr.mxu0 0.0
    %542 = vmatpush1.msra.mxu0 0.0
    %543 = vmatprep.subr.mxu0 0.0
    %544 = vmatpush1.msra.mxu0 0.0
    %545 = vmatprep.subr.mxu0 0.0
    %546 = vmatpush1.msra.mxu0 0.0
    %547 = vmatprep.subr.mxu0 0.0
    %548 = vmatpush1.msra.mxu0 0.0
    %549 = vmatprep.subr.mxu0 0.0
    %550 = vmatpush1.msra.mxu0 0.0
    %551 = vmatprep.subr.mxu0 0.0
    %552 = vmatpush1.msra.mxu0 0.0
    %553 = vmatprep.subr.mxu0 0.0
    %554 = vmatpush1.msra.mxu0 0.0
    %555 = vmatprep.subr.mxu0 0.0
    %556 = vmatpush1.msra.mxu0 0.0
    %557 = vmatprep.subr.mxu0 0.0
    %558 = vmatpush1.msra.mxu0 0.0
    %559 = vmatprep.subr.mxu0 0.0
    %560 = vmatpush1.msra.mxu0 0.0
    %561 = vmatprep.subr.mxu0 0.0
    %562 = vmatpush1.msra.mxu0 0.0
    %563 = vmatprep.mubr.f32.mxu0 0.0
    %564 = vmatmul.mubr.f32.gmra.mrb[0].mxu0 %v497
    %v565 = vpop.f32.mrb[0].mxu0
    %v566 = vadd.f32 0.0, %v565
    %v567 = vpop.f32.mrb[0].mxu0
    %568 = vdwg.mxu0
    %v569 = vsel %vm323, %v566, 0.0
    %v570 = vrot.slane %v569, 4
    %v571 = vadd.f32 %v569, %v570
    %v572 = vrot.slane %v571, 2
    %v573 = vadd.f32 %v571, %v572
    %v574 = vrot.slane %v573, 1
    %v575 = vadd.f32 %v573, %v574
    %v576 = vmul.f32 %v575, %v220
    %v577 = vsub.f32 %v566, %v576
    %v578 = vmul.f32 %v577, %v577
    %v579 = vsel %vm323, %v578, 0.0
    %v580 = vrot.slane %v579, 4
    %v581 = vadd.f32 %v579, %v580
    %v582 = vrot.slane %v581, 2
    %v583 = vadd.f32 %v581, %v582
    %v584 = vrot.slane %v583, 1
    %v585 = vadd.f32 %v583, %v584
    %v586 = vmul.f32 %v585, %v220
    %v587 = vadd.f32 %v586, 1e-08
    %v588 = vrsqrt.pop %v587
    %v589 = vmul.f32 %v577, %v588
    %v591 = vlaneseq
    %v592 = vshrl.u32 %v591, 7
    %v593 = vsub.s32 0, %v592
    %v594 = vrot.slane %v455, %v593
    %v596 = vmul.f32 %v589, %v594
    %v598 = vlaneseq
    %v599 = vshrl.u32 %v598, 7
    %v600 = vsub.s32 0, %v599
    %v601 = vrot.slane %v456, %v600
    %v603 = vadd.f32 %v596, %v601
    %v604 = vmul.f32 %v603, %v603
    %v605 = vmul.f32 %v603, %v604
    %v606 = vmul.f32 %v605, 0.044715
    %v607 = vadd.f32 %v603, %v606
    %v608 = vmul.f32 %v607, 0.7978846
    %v609 = vtanh.pop %v608
    %v610 = vadd.f32 %v609, 1.0
    %v611 = vmul.f32 %v610, 0.5
    %v612 = vmul.f32 %v603, %v611
    %v614 = vsel %vm187, %v612, 0
    %616 = vmatprep.subr.mxu0 0.0
    %617 = vmatpush1.msra.mxu0 %v457
    %618 = vmatprep.subr.mxu0 0.0
    %619 = vmatpush1.msra.mxu0 %v458
    %620 = vmatprep.subr.mxu0 0.0
    %621 = vmatpush1.msra.mxu0 %v459
    %622 = vmatprep.subr.mxu0 0.0
    %623 = vmatpush1.msra.mxu0 %v460
    %624 = vmatprep.subr.mxu0 0.0
    %625 = vmatpush1.msra.mxu0 0.0
    %626 = vmatprep.subr.mxu0 0.0
    %627 = vmatpush1.msra.mxu0 0.0
    %628 = vmatprep.subr.mxu0 0.0
    %629 = vmatpush1.msra.mxu0 0.0
    %630 = vmatprep.subr.mxu0 0.0
    %631 = vmatpush1.msra.mxu0 0.0
    %632 = vmatprep.subr.mxu0 0.0
    %633 = vmatpush1.msra.mxu0 0.0
    %634 = vmatprep.subr.mxu0 0.0
    %635 = vmatpush1.msra.mxu0 0.0
    %636 = vmatprep.subr.mxu0 0.0
    %637 = vmatpush1.msra.mxu0 0.0
    %638 = vmatprep.subr.mxu0 0.0
    %639 = vmatpush1.msra.mxu0 0.0
    %640 = vmatprep.subr.mxu0 0.0
    %641 = vmatpush1.msra.mxu0 0.0
    %642 = vmatprep.subr.mxu0 0.0
    %643 = vmatpush1.msra.mxu0 0.0
    %644 = vmatprep.subr.mxu0 0.0
    %645 = vmatpush1.msra.mxu0 0.0
    %646 = vmatprep.subr.mxu0 0.0
    %647 = vmatpush1.msra.mxu0 0.0
    %648 = vmatprep.subr.mxu0 0.0
    %649 = vmatpush1.msra.mxu0 0.0
    %650 = vmatprep.subr.mxu0 0.0
    %651 = vmatpush1.msra.mxu0 0.0
    %652 = vmatprep.subr.mxu0 0.0
    %653 = vmatpush1.msra.mxu0 0.0
    %654 = vmatprep.subr.mxu0 0.0
    %655 = vmatpush1.msra.mxu0 0.0
    %656 = vmatprep.subr.mxu0 0.0
    %657 = vmatpush1.msra.mxu0 0.0
    %658 = vmatprep.subr.mxu0 0.0
    %659 = vmatpush1.msra.mxu0 0.0
    %660 = vmatprep.subr.mxu0 0.0
    %661 = vmatpush1.msra.mxu0 0.0
    %662 = vmatprep.subr.mxu0 0.0
    %663 = vmatpush1.msra.mxu0 0.0
    %664 = vmatprep.subr.mxu0 0.0
    %665 = vmatpush1.msra.mxu0 0.0
    %666 = vmatprep.subr.mxu0 0.0
    %667 = vmatpush1.msra.mxu0 0.0
    %668 = vmatprep.subr.mxu0 0.0
    %669 = vmatpush1.msra.mxu0 0.0
    %670 = vmatprep.subr.mxu0 0.0
    %671 = vmatpush1.msra.mxu0 0.0
    %672 = vmatprep.subr.mxu0 0.0
    %673 = vmatpush1.msra.mxu0 0.0
    %674 = vmatprep.subr.mxu0 0.0
    %675 = vmatpush1.msra.mxu0 0.0
    %676 = vmatprep.subr.mxu0 0.0
    %677 = vmatpush1.msra.mxu0 0.0
    %678 = vmatprep.subr.mxu0 0.0
    %679 = vmatpush1.msra.mxu0 0.0
    %680 = vmatprep.mubr.f32.mxu0 0.0
    %681 = vmatmul.mubr.f32.gmra.mrb[0].mxu0 %v614
    %v682 = vpop.f32.mrb[0].mxu0
    %v683 = vadd.f32 0.0, %v682
    %v684 = vpop.f32.mrb[0].mxu0
    %685 = vdwg.mxu0
    %687 = vrot.lane.b32.xlu0 %v683, 16
    %v688 = vpop.permute.xlu0 %687
    %vm690 = vcmask 130048
    %v691 = vsel %vm690, %v438, %v688
    %692 = vst.msk [vmem:[%s16] sm:$0xf] %vm323, %v691
    // Predicated region
    $region90: #{comprehension_module_forward.1} parent=1 // pred_check
      _
    $region91: #{comprehension_module_forward.1} parent=1 // pred_check_branch
      %694 = sbr.rel (0) target = $region93
    $region92: #{comprehension_module_forward.1} parent=1 // pred_region
      _
    $region93: #{comprehension_module_forward.1} parent=1 // pred_fallthru
      _
    // Predicated region
    $region94: #{comprehension_module_forward.1} parent=1 // pred_check
      _
    $region95: #{comprehension_module_forward.1} parent=1 // pred_check_branch
      %696 = sbr.rel (0) target = $region97
    $region96: #{comprehension_module_forward.1} parent=1 // pred_region
      _
    $region97: #{comprehension_module_forward.1} parent=1 // pred_fallthru
      _
    %697 = vsyncpa [#allocation3], 1
    %698 = vsyncpa [#allocation5], 1
    %699 = vsyncpa [#allocation8], 1
    %700 = vsyncpa [#allocation11], 1

</llo_original>
